<compile_context>
chip_gen: v5e
topology: v5e:2x2
jax: 0.10.0
libtpu: 0.0.40
codegen_flags: <defaults>
</compile_context>

<pallas_src>
import functools

import jax
import jax.numpy as jnp
from jax.experimental import pallas as pl
from jax.experimental.pallas import tpu as pltpu

GRAD_BOOST = 10.0
NORM_EPS = 1e-8
LEAKY_SLOPE = 0.01


def _round_down(a, b):
    return a // b * b


# --------------------------------------------------------------------------
# Kernel 1: Quad_module + per-sample Norm.
# grid = (batch, spatial tiles); spatial axis is a reduction accumulated in a
# lane-dense VMEM scratch.
# --------------------------------------------------------------------------
def _quad_norm_kernel(x_ref, smT_ref, o_ref, acc_ref, *,
                      n_quad, hw, hw_tile, chunk, needs_mask, compute_dtype):
    t = pl.program_id(1)

    @pl.when(t == 0)
    def _init():
        acc_ref[...] = jnp.zeros_like(acc_ref)

    smT = smT_ref[...]                       # (Q, C) bf16, resident
    n_chunks = hw_tile // chunk

    # Chunk the lane axis so MXU results are consumed as they pop and the
    # (Q, hw_tile) f32 intermediate never materializes.
    for c in range(n_chunks):
        xc = x_ref[0, :, pl.ds(c * chunk, chunk)].astype(compute_dtype)  # (C, chunk)
        yc = jnp.dot(smT, xc, preferred_element_type=jnp.float32)        # (Q, chunk) f32
        yc2 = yc * yc
        if needs_mask:
            # Out-of-bounds lanes of the (partial) edge block are garbage, not
            # zero -> zero their squared contribution before accumulating.
            pos = (t * hw_tile + c * chunk
                   + jax.lax.broadcasted_iota(jnp.int32, yc2.shape, 1))
            yc2 = jnp.where(pos < hw, yc2, 0.0)
        acc_ref[...] += yc2                  # lane-dense f32 accumulator

    @pl.when(t == pl.num_programs(1) - 1)
    def _finalize():
        q = jnp.sum(acc_ref[...], axis=1, keepdims=True)        # (Q, 1)
        m = jnp.mean(q, axis=0, keepdims=True)
        var = jnp.sum((q - m) ** 2, axis=0, keepdims=True) / (n_quad - 1)
        s = jnp.sqrt(var)                    # unbiased std (torch.std default)
        o_ref[...] = ((q - m) / (s + NORM_EPS))[None]            # (1, Q, 1)


def quad_norm(x_nchw, w, *, block_bytes=8 * 1024 * 1024,
              compute_dtype=jnp.bfloat16):
    """x_nchw: (N, C, H, W) f32; w: (C, Q) Quad_module weight.  Returns (N, Q) f32."""
    N, C, H, W = x_nchw.shape
    HW = H * W
    Cw, Q = w.shape
    assert C == Cw and Q > 1

    # Softmax over channels is batch/tile invariant -> compute once, hand the
    # kernel the already-transposed (Q, C) matrix in bf16.
    sm = jax.nn.softmax(w.astype(jnp.float32) * GRAD_BOOST, axis=0)
    smT = sm.T.astype(compute_dtype)                             # (Q, C)

    # Channel-major flatten (identical to PyTorch's x.view(N, C, H*W)); the
    # reshape is free, and the f32 array goes straight into the kernel -- the
    # bf16 cast happens per-tile inside the kernel.
    x = x_nchw.reshape(N, C, HW)
    in_bytes = jnp.dtype(x.dtype).itemsize

    # C-aware spatial tile: ~block_bytes per f32 input block, lane-aligned.
    tile_from_budget = max(128, _round_down(block_bytes // (C * in_bytes), 128))
    if HW <= tile_from_budget:
        hw_tile = HW                        # full extent -> single tile, no mask
    else:
        hw_tile = tile_from_budget          # multiple of 128
    num_tiles = pl.cdiv(HW, hw_tile)
    needs_mask = (HW % hw_tile) != 0

    # In-kernel lane chunk (<=1024, divides hw_tile).
    if hw_tile <= 1024:
        chunk = hw_tile
    else:
        chunk = 1024
        while hw_tile % chunk != 0:
            chunk -= 128

    kernel = functools.partial(
        _quad_norm_kernel, n_quad=Q, hw=HW, hw_tile=hw_tile, chunk=chunk,
        needs_mask=needs_mask, compute_dtype=compute_dtype)

    # TODO(synk): for N == 1 on v7x, add a leading parallel axis splitting the
    # HW reduction in two (per-half accumulators + tiny combine) so the second
    # TensorCore is not idle.
    out = pl.pallas_call(
        kernel,
        out_shape=jax.ShapeDtypeStruct((N, Q, 1), jnp.float32),
        grid=(N, num_tiles),
        in_specs=[
            pl.BlockSpec((1, C, hw_tile), lambda n, t: (n, 0, t)),
            pl.BlockSpec((Q, C), lambda n, t: (0, 0)),   # constant block -> resident
        ],
        out_specs=pl.BlockSpec((1, Q, 1), lambda n, t: (n, 0, 0)),
        scratch_shapes=[pltpu.VMEM((Q, chunk), jnp.float32)],
        compiler_params=pltpu.CompilerParams(
            dimension_semantics=("parallel", "arbitrary"),
            # Re-derived for v7x's 64 MiB physical VMEM: 2 double-buffered
            # ~8 MiB input blocks + small scratch stay well under this.
            vmem_limit_bytes=48 * 1024 * 1024,
        ),
    )(x, smT)
    return out.reshape(N, Q)


# --------------------------------------------------------------------------
# Kernel 2: FC head  Linear -> Norm -> LeakyReLU -> Linear -> Norm ->
#           LeakyReLU -> Linear, gridded over batch rows (weights resident).
# --------------------------------------------------------------------------
def _norm_lastdim(h):
    d = h.shape[-1]
    m = jnp.mean(h, axis=-1, keepdims=True)
    var = jnp.sum((h - m) ** 2, axis=-1, keepdims=True) / (d - 1)
    return (h - m) / (jnp.sqrt(var) + NORM_EPS)


def _leaky(h):
    return jnp.where(h >= 0, h, LEAKY_SLOPE * h)


def _fc_kernel(x_ref, w1_ref, b1_ref, w2_ref, b2_ref, w3_ref, b3_ref, o_ref):
    def mm(a, w_ref):
        # bf16 operands, f32 accumulation (HIGHEST dropped per review).
        return jnp.dot(a.astype(jnp.bfloat16), w_ref[...],
                       preferred_element_type=jnp.float32)

    h = mm(x_ref[...], w1_ref) + b1_ref[...]
    h = _leaky(_norm_lastdim(h))
    h = mm(h, w2_ref) + b2_ref[...]
    h = _leaky(_norm_lastdim(h))
    o_ref[...] = mm(h, w3_ref) + b3_ref[...]


def texture_fc(x, fc_params, *, row_tile=256):
    w1, b1, w2, b2, w3, b3 = fc_params
    N, D = x.shape
    nc_w = w3.shape[1]

    # bf16 weights halve the weight DMA; biases stay f32.
    w1b, w2b, w3b = (w.astype(jnp.bfloat16) for w in (w1, w2, w3))

    if N <= row_tile:
        tm, x_in = N, x
    else:
        tm = row_tile
        n_pad = (N + tm - 1) // tm * tm
        x_in = jnp.pad(x, ((0, n_pad - N), (0, 0))) if n_pad != N else x
    rows = x_in.shape[0]

    out = pl.pallas_call(
        _fc_kernel,
        out_shape=jax.ShapeDtypeStruct((rows, nc_w), jnp.float32),
        grid=(rows // tm,),
        in_specs=[
            pl.BlockSpec((tm, D), lambda i: (i, 0)),
            pl.BlockSpec(w1b.shape, lambda i: (0, 0)),
            pl.BlockSpec(b1.shape, lambda i: (0, 0)),
            pl.BlockSpec(w2b.shape, lambda i: (0, 0)),
            pl.BlockSpec(b2.shape, lambda i: (0, 0)),
            pl.BlockSpec(w3b.shape, lambda i: (0, 0)),
            pl.BlockSpec(b3.shape, lambda i: (0, 0)),
        ],
        out_specs=pl.BlockSpec((tm, nc_w), lambda i: (i, 0)),
        compiler_params=pltpu.CompilerParams(dimension_semantics=("parallel",)),
    )(x_in, w1b, b1, w2b, b2, w3b, b3)
    return out[:N]


# --------------------------------------------------------------------------
# Full Texture_Encoder forward.
# --------------------------------------------------------------------------
def texture_encoder_forward(vgg_outs, quad_ws, fc_params, *,
                            block_bytes=8 * 1024 * 1024,
                            compute_dtype=jnp.bfloat16):
    descs = [quad_norm(x, w, block_bytes=block_bytes, compute_dtype=compute_dtype)
             for x, w in zip(vgg_outs, quad_ws)]
    # TODO(synk): per-level kernels could write straight into their column
    # slice of the concatenated buffer to skip this tiny XLA concat.
    cat = jnp.concatenate(descs, axis=1)
    return texture_fc(cat, fc_params)


# --------------------------------------------------------------------------
# Pure-JAX reference with the SAME numeric choices (bf16 MXU operands, f32
# accumulation) so the correctness check validates the kernel logic tightly.
# --------------------------------------------------------------------------
def _reference(vgg_outs, quad_ws, fc_params, compute_dtype=jnp.bfloat16):
    feats = []
    for x_nchw, w in zip(vgg_outs, quad_ws):
        N, C, H, W = x_nchw.shape
        sm = jax.nn.softmax(w.astype(jnp.float32) * GRAD_BOOST, axis=0)
        sm = sm.astype(compute_dtype)
        M = x_nchw.reshape(N, C, H * W).astype(compute_dtype)
        y = jnp.einsum("ncp,cq->npq", M, sm, preferred_element_type=jnp.float32)
        q = jnp.sum(y ** 2, axis=1)
        m = jnp.mean(q, axis=-1, keepdims=True)
        s = jnp.std(q, axis=-1, keepdims=True, ddof=1)
        feats.append((q - m) / (s + NORM_EPS))
    h = jnp.concatenate(feats, axis=1)
    w1, b1, w2, b2, w3, b3 = fc_params

    def mm(a, w):
        return jnp.dot(a.astype(jnp.bfloat16), w.astype(jnp.bfloat16),
                       preferred_element_type=jnp.float32)

    h = mm(h, w1) + b1
    h = _leaky(_norm_lastdim(h))
    h = mm(h, w2) + b2
    h = _leaky(_norm_lastdim(h))
    return mm(h, w3) + b3


# --------------------------------------------------------------------------
if __name__ == "__main__":
    key = jax.random.PRNGKey(0)

    # Small shapes consistent with the module's forward.
    N = 2
    list_channels = [4, 8]     # per-level channel counts (small stand-ins)
    spatials = [12, 8]         # H = W per level -> HW = 144 (non-128-aligned), 64
    n_quad = 32
    nc_w = 16
    hidden = 512               # hard-coded in Texture_Encoder.fc

    keys = jax.random.split(key, 16)
    ki = iter(keys)

    # VGG feature volumes (NCHW, like PyTorch).
    vgg_outs = [
        jax.random.normal(next(ki), (N, c, s, s), dtype=jnp.float32)
        for c, s in zip(list_channels, spatials)
    ]

    # Quad_module params: w1 = (5 / grad_boost) * rand(n_in, n_out) = 0.5*U[0,1)
    quad_ws = [
        0.5 * jax.random.uniform(next(ki), (c, n_quad), dtype=jnp.float32)
        for c in list_channels
    ]

    # FC params, stored as (in, out) for right-multiplication; biases as (1, out).
    def linear_params(k, fan_in, fan_out):
        kw, kb = jax.random.split(k)
        w = jax.random.normal(kw, (fan_in, fan_out), dtype=jnp.float32) / jnp.sqrt(fan_in)
        b = 0.01 * jax.random.normal(kb, (1, fan_out), dtype=jnp.float32)
        return w, b

    in_dim = len(list_channels) * n_quad
    w1, b1 = linear_params(next(ki), in_dim, hidden)
    w2, b2 = linear_params(next(ki), hidden, hidden)
    w3, b3 = linear_params(next(ki), hidden, nc_w)
    fc_params = (w1, b1, w2, b2, w3, b3)

    # block_bytes=2048 deliberately forces the multi-tile spatial reduction and
    # the masked partial-edge-tile path at toy sizes (HW=144 -> tiles of 128
    # with a 16-lane valid tail; HW=64 -> a single full-extent tile).  The
    # default of ~8 MiB is what real VGG feature maps would use.
    out = texture_encoder_forward(vgg_outs, quad_ws, fc_params, block_bytes=2048)
    out = jax.block_until_ready(out)
    assert out.shape == (N, nc_w), out.shape

    ref = jax.block_until_ready(_reference(vgg_outs, quad_ws, fc_params))
    assert jnp.allclose(out, ref, rtol=1e-2, atol=1e-2), (
        "max abs diff", float(jnp.max(jnp.abs(out - ref)))
    )

    print("KERNEL_OK")
</pallas_src>

<mosaic_0001>
module attributes {stable_mosaic.version = 11 : i64} {
  func.func @_quad_norm_kernel(%arg0: i32, %arg1: i32, %arg2: memref<1x4x128xf32, #tpu.memory_space<vmem>>, %arg3: memref<32x4xbf16, #tpu.memory_space<vmem>>, %arg4: memref<1x32x1xf32, #tpu.memory_space<vmem>>, %arg5: memref<32x128xf32, #tpu.memory_space<vmem>>) attributes {dimension_semantics = [#tpu.dimension_semantics<parallel>, #tpu.dimension_semantics<arbitrary>], iteration_bounds = array<i64: 2, 2>, scalar_prefetch = 0 : i64, scratch_operands = 1 : i64, tpu.core_type = #tpu.core_type<tc>, window_params = [{transform_indices = @transform_0, window_bounds = array<i64: 1, 4, 128>}, {pipeline_mode = #tpu.pipeline_mode<synchronous>, transform_indices = @transform_1, window_bounds = array<i64: 32, 4>}, {transform_indices = @transform_2, window_bounds = array<i64: 1, 32, 1>}]} {
    %c0_i32 = arith.constant 0 : i32
    %0 = arith.cmpi eq, %arg1, %c0_i32 : i32
    %1 = arith.extui %0 : i1 to i32
    %c0_i32_0 = arith.constant 0 : i32
    %2 = arith.cmpi ne, %1, %c0_i32_0 : i32
    scf.if %2 {
      %cst_12 = arith.constant 0.000000e+00 : f32
      %24 = vector.broadcast %cst_12 : f32 to vector<32x128xf32>
      %c0_13 = arith.constant 0 : index
      %c0_14 = arith.constant 0 : index
      %25 = vector.load %arg5[%c0_13, %c0_14] : memref<32x128xf32, #tpu.memory_space<vmem>>, vector<32x128xf32>
      tpu.vector_store %arg5[%c0_13, %c0_14], %24 {strides = array<i32>} : memref<32x128xf32, #tpu.memory_space<vmem>>, vector<32x128xf32>,
    } else {
    }
    %c0 = arith.constant 0 : index
    %c0_1 = arith.constant 0 : index
    %3 = vector.load %arg3[%c0, %c0_1] : memref<32x4xbf16, #tpu.memory_space<vmem>>, vector<32x4xbf16>
    %c0_2 = arith.constant 0 : index
    %c0_3 = arith.constant 0 : index
    %c0_4 = arith.constant 0 : index
    %4 = vector.load %arg2[%c0_2, %c0_3, %c0_4] : memref<1x4x128xf32, #tpu.memory_space<vmem>>, vector<1x4x128xf32>
    %5 = vector.shape_cast %4 : vector<1x4x128xf32> to vector<4x128xf32>
    %6 = arith.truncf %5 : vector<4x128xf32> to vector<4x128xbf16>
    %cst = arith.constant dense<0.000000e+00> : vector<32x128xf32>
    %7 = tpu.matmul %3, %6, %cst {dimension_numbers = #tpu.dot_dimension_numbers<[1], [0], [0], [1], [0, 0, 1, 1], [], []>} : vector<32x4xbf16>, vector<4x128xbf16>, vector<32x128xf32> -> vector<32x128xf32>
    %8 = arith.mulf %7, %7 : vector<32x128xf32>
    %c128_i32 = arith.constant 128 : i32
    %9 = arith.muli %arg1, %c128_i32 : i32
    %c0_i32_5 = arith.constant 0 : i32
    %10 = arith.addi %9, %c0_i32_5 : i32
    %11 = tpu.iota {dimensions = array<i32: 1>} : vector<32x128xi32>
    %12 = vector.broadcast %10 : i32 to vector<32x128xi32>
    %13 = arith.addi %12, %11 : vector<32x128xi32>
    %c144_i32 = arith.constant 144 : i32
    %14 = vector.broadcast %c144_i32 : i32 to vector<32x128xi32>
    %15 = arith.cmpi slt, %13, %14 : vector<32x128xi32>
    %cst_6 = arith.constant 0.000000e+00 : f32
    %16 = vector.broadcast %cst_6 : f32 to vector<32x128xf32>
    %17 = arith.select %15, %8, %16 : vector<32x128xi1>, vector<32x128xf32>
    %c0_7 = arith.constant 0 : index
    %c0_8 = arith.constant 0 : index
    %18 = vector.load %arg5[%c0_7, %c0_8] : memref<32x128xf32, #tpu.memory_space<vmem>>, vector<32x128xf32>
    %19 = arith.addf %18, %17 : vector<32x128xf32>
    %c0_9 = arith.constant 0 : index
    %c0_10 = arith.constant 0 : index
    %20 = vector.load %arg5[%c0_9, %c0_10] : memref<32x128xf32, #tpu.memory_space<vmem>>, vector<32x128xf32>
    tpu.vector_store %arg5[%c0_9, %c0_10], %19 {strides = array<i32>} : memref<32x128xf32, #tpu.memory_space<vmem>>, vector<32x128xf32>,
    %c1_i32 = arith.constant 1 : i32
    %21 = arith.cmpi eq, %arg1, %c1_i32 : i32
    %22 = arith.extui %21 : i1 to i32
    %c0_i32_11 = arith.constant 0 : i32
    %23 = arith.cmpi ne, %22, %c0_i32_11 : i32
    scf.if %23 {
      %c0_12 = arith.constant 0 : index
      %c0_13 = arith.constant 0 : index
      %24 = vector.load %arg5[%c0_12, %c0_13] : memref<32x128xf32, #tpu.memory_space<vmem>>, vector<32x128xf32>
      %cst_14 = arith.constant dense<0.000000e+00> : vector<32xf32>
      %25 = vector.multi_reduction <add>, %24, %cst_14 [1] : vector<32x128xf32> to vector<32xf32>
      %26 = vector.shape_cast %25 : vector<32xf32> to vector<32x1xf32>
      %cst_15 = arith.constant dense<0.000000e+00> : vector<1xf32>
      %27 = vector.multi_reduction <add>, %26, %cst_15 [0] : vector<32x1xf32> to vector<1xf32>
      %28 = vector.shape_cast %27 : vector<1xf32> to vector<1x1xf32>
      %cst_16 = arith.constant 3.200000e+01 : f32
      %29 = vector.broadcast %cst_16 : f32 to vector<1x1xf32>
      %30 = arith.divf %28, %29 : vector<1x1xf32>
      %31 = vector.broadcast %30 : vector<1x1xf32> to vector<32x1xf32>
      %32 = arith.subf %26, %31 : vector<32x1xf32>
      %33 = arith.mulf %32, %32 : vector<32x1xf32>
      %cst_17 = arith.constant dense<0.000000e+00> : vector<1xf32>
      %34 = vector.multi_reduction <add>, %33, %cst_17 [0] : vector<32x1xf32> to vector<1xf32>
      %35 = vector.shape_cast %34 : vector<1xf32> to vector<1x1xf32>
      %cst_18 = arith.constant 3.100000e+01 : f32
      %36 = vector.broadcast %cst_18 : f32 to vector<1x1xf32>
      %37 = arith.divf %35, %36 : vector<1x1xf32>
      %38 = math.sqrt %37 : vector<1x1xf32>
      %39 = vector.broadcast %30 : vector<1x1xf32> to vector<32x1xf32>
      %40 = arith.subf %26, %39 : vector<32x1xf32>
      %cst_19 = arith.constant 9.99999993E-9 : f32
      %41 = vector.broadcast %cst_19 : f32 to vector<1x1xf32>
      %42 = arith.addf %38, %41 : vector<1x1xf32>
      %43 = vector.broadcast %42 : vector<1x1xf32> to vector<32x1xf32>
      %44 = arith.divf %40, %43 : vector<32x1xf32>
      %45 = vector.shape_cast %44 : vector<32x1xf32> to vector<1x32x1xf32>
      %c0_20 = arith.constant 0 : index
      %c0_21 = arith.constant 0 : index
      %c0_22 = arith.constant 0 : index
      %46 = vector.load %arg4[%c0_20, %c0_21, %c0_22] : memref<1x32x1xf32, #tpu.memory_space<vmem>>, vector<1x32x1xf32>
      tpu.vector_store %arg4[%c0_20, %c0_21, %c0_22], %45 {strides = array<i32>} : memref<1x32x1xf32, #tpu.memory_space<vmem>>, vector<1x32x1xf32>,
    } else {
    }
    return
  }
  func.func @transform_0(%arg0: i32, %arg1: i32) -> (i32, i32, i32) {
    %c0_i32 = arith.constant 0 : i32
    %c0_i32_0 = arith.constant 0 : i32
    return %arg0, %c0_i32, %arg1 : i32, i32, i32
  }
  func.func @transform_1(%arg0: i32, %arg1: i32) -> (i32, i32) {
    %c0_i32 = arith.constant 0 : i32
    %c0_i32_0 = arith.constant 0 : i32
    %c0_i32_1 = arith.constant 0 : i32
    return %c0_i32, %c0_i32_0 : i32, i32
  }
  func.func @transform_2(%arg0: i32, %arg1: i32) -> (i32, i32, i32) {
    %c0_i32 = arith.constant 0 : i32
    %c0_i32_0 = arith.constant 0 : i32
    %c0_i32_1 = arith.constant 0 : i32
    return %arg0, %c0_i32, %c0_i32_0 : i32, i32, i32
  }
}

</mosaic_0001>

<llo_original>
// kernel: tpu_custom_call.1
$region0: #{tpu_custom_call.1}
  #allocation0 [shape = 'u32[]', space=smem, size = 0x4, offset = 0x4, fixed_abs, tag = 'smem constant byte address 0x4 - core index']
  #allocation1 [shape = 'u32[72,128]{1,0:T(1,128)}', space=vmem, size = 0x9000, scoped, tag = 'internal scratch']
  #allocation2 [shape = 'f32[32,128]{1,0:T(8,128)}', space=vmem, size = 0x4000, scoped, tag = 'scratch operand']
  %s0 = inlined_call_operand.vmem [shape: f32[2,4,144], index: 0, kind: input, shape index: {}]
  %s1 = inlined_call_operand.vmem [shape: bf16[32,4], index: 1, kind: input, shape index: {}]
  %s2 = inlined_call_operand.vmem [shape: f32[2,32,1], index: 2, kind: output, shape index: {}]
  %s3 = sld [smem:[#allocation0]]
  $region49: #{tpu_custom_call.1} parent=0
    _
  %s5 = ssub.s32 1, %s3
  %s6 = scalar_select 0, %s5, %s3
  loop: start=0, step=1, limit=6
  $region2: #{tpu_custom_call.1} parent=0 // loop_pre_header
    _
  $region3: #{tpu_custom_call.1} parent=0 // loop_header
    %s8 = sphi 0, %s12
    %p9 = scmp.ge.s32.totalorder %s8, 6
    %s15 = sphi 0, %s27
    %s16 = sphi 0, %s23
    %s17 = sphi 0, %s15
    %s18 = sphi 0, %s16
    %s19 = sphi 0, %s17
    %s20 = sphi 0, %s18
    %s32 = sphi 0, %s34
    %s35 = sphi 0, %s32
    %s36 = sphi 0, %s35
    %s52 = sphi 0, %s36
    %s56 = sphi 0, %s56
    %s58 = sphi 0, %s56
    %s59 = sphi 0, %s58
    %s73 = sphi 0, %s59
    %s79 = sphi 0, %s81
    %s82 = sphi 0, %s79
    %s83 = sphi 0, %s82
    %s99 = sphi 0, %s83
  $region4: #{tpu_custom_call.1} parent=0 // loop_header_branch
    %11 = sbr.rel (%p9) target = $region8
  $region5: #{tpu_custom_call.1} parent=0 // loop_body
    %s13 = ssub.s32 %s8, 1
    %s14 = ssub.s32 %s8, 2
    %s21 = sadd.s32 1, %s16
    %p22 = scmp.ge.s32.totalorder %s21, 2
    %s23 = scalar_select %p22, 0, %s21
    %s24 = sadd.s32 1, %s15
    %s25 = scalar_select %p22, %s24, %s15
    %p26 = scmp.ge.s32.totalorder %s25, 2
    %s27 = scalar_select %p26, 0, %s25
    %s28 = ssub.s32 %s15, %s27
    %s29 = ssub.s32 %s16, %s23
    %s30 = sor.u32 %s28, %s29
    %p31 = scmp.eq.s32.totalorder %s30, 0
    %s33 = sadd.s32 %s32, 1
    %s34 = scalar_select %p31, %s32, %s33
    %p37 = pneg %p31
    %p38 = scmp.eq.s32.totalorder %s8, 3
    %p39 = por %p37, %p38
    %p40 = scmp.ne.s32.totalorder %s32, %s35
    %p41 = scmp.eq.s32.totalorder %s8, 0
    %p42 = por %p40, %p41
    %p43 = scmp.ne.s32.totalorder %s32, %s35
    %p44 = scmp.eq.s32.totalorder %s13, 3
    %p45 = por %p43, %p44
    %p46 = scmp.ne.s32.totalorder %s35, %s36
    %p47 = scmp.eq.s32.totalorder %s13, 0
    %p48 = por %p46, %p47
    %p49 = scmp.ne.s32.totalorder %s35, %s36
    %p50 = scmp.eq.s32.totalorder %s14, 3
    %p51 = por %p49, %p50
    %p53 = scmp.ne.s32.totalorder %s36, %s52
    %p54 = scmp.eq.s32.totalorder %s14, 0
    %p55 = por %p53, %p54
    %s57 = sadd.s32 %s56, 1
    %p60 = scmp.eq.s32.totalorder %s8, 3
    %p61 = scmp.ne.s32.totalorder %s56, %s58
    %p62 = scmp.eq.s32.totalorder %s8, 0
    %p63 = por %p61, %p62
    %p64 = scmp.ne.s32.totalorder %s56, %s58
    %p65 = scmp.eq.s32.totalorder %s13, 3
    %p66 = por %p64, %p65
    %p67 = scmp.ne.s32.totalorder %s58, %s59
    %p68 = scmp.eq.s32.totalorder %s13, 0
    %p69 = por %p67, %p68
    %p70 = scmp.ne.s32.totalorder %s58, %s59
    %p71 = scmp.eq.s32.totalorder %s14, 3
    %p72 = por %p70, %p71
    %p74 = scmp.ne.s32.totalorder %s59, %s73
    %p75 = scmp.eq.s32.totalorder %s14, 0
    %p76 = por %p74, %p75
    %s77 = ssub.s32 %s15, %s27
    %p78 = scmp.eq.s32.totalorder %s77, 0
    %s80 = sadd.s32 %s79, 1
    %s81 = scalar_select %p78, %s79, %s80
    %p84 = pneg %p78
    %p85 = scmp.eq.s32.totalorder %s8, 3
    %p86 = por %p84, %p85
    %p87 = scmp.ne.s32.totalorder %s79, %s82
    %p88 = scmp.eq.s32.totalorder %s8, 0
    %p89 = por %p87, %p88
    %p90 = scmp.ne.s32.totalorder %s79, %s82
    %p91 = scmp.eq.s32.totalorder %s13, 3
    %p92 = por %p90, %p91
    %p93 = scmp.ne.s32.totalorder %s82, %s83
    %p94 = scmp.eq.s32.totalorder %s13, 0
    %p95 = por %p93, %p94
    %p96 = scmp.ne.s32.totalorder %s82, %s83
    %p97 = scmp.eq.s32.totalorder %s14, 3
    %p98 = por %p96, %p97
    %p100 = scmp.ne.s32.totalorder %s83, %s99
    %p101 = scmp.eq.s32.totalorder %s14, 0
    %p102 = por %p100, %p101
    %p103 = scmp.le.s32.totalorder 1, %s8
    %p104 = scmp.lt.s32.totalorder %s8, 5
    %p105 = pnand %p103, %p104
    %p106 = pneg %p105
    // Predicated region
    $region9: #{tpu_custom_call.1} parent=5 // pred_check
      _
    $region10: #{tpu_custom_call.1} parent=5 // pred_check_branch
      %108 = sbr.rel (%p105) target = $region12
    $region11: #{tpu_custom_call.1} parent=5 // pred_region
      %s109 = ssub.s32 %s8, 1
      // Predicated region
      $region13: #{tpu_custom_call.1} parent=11 // pred_check
        %p110 = pneg %p69
      $region14: #{tpu_custom_call.1} parent=11 // pred_check_branch
        %112 = sbr.rel (%p110) target = $region16
      $region15: #{tpu_custom_call.1} parent=11 // pred_region
        _
      $region16: #{tpu_custom_call.1} parent=11 // pred_fallthru
        _
    $region12: #{tpu_custom_call.1} parent=5 // pred_fallthru
      _
    %p113 = scmp.lt.s32.totalorder %s8, 4
    // Predicated region
    $region17: #{tpu_custom_call.1} parent=5 // pred_check
      %p114 = pneg %p113
    $region18: #{tpu_custom_call.1} parent=5 // pred_check_branch
      %116 = sbr.rel (%p114) target = $region20
    $region19: #{tpu_custom_call.1} parent=5 // pred_region
      // Predicated region
      $region21: #{tpu_custom_call.1} parent=19 // pred_check
        %p117 = pneg %p42
      $region22: #{tpu_custom_call.1} parent=19 // pred_check_branch
        %119 = sbr.rel (%p117) target = $region24
      $region23: #{tpu_custom_call.1} parent=19 // pred_region
        %p120 = scmp.lt.s32.totalorder %s15, 1
        %s121 = scalar_select %p120, %s15, 1
        %p122 = scmp.lt.s32.totalorder %s16, 1
        %s123 = scalar_select %p122, %s16, 1
        %s124 = smul.addr %s121, 2
        %s125 = sadd.s32 %s123, %s124
        %s126 = smul.addr %s125, 4
        %s127 = scalar_lea.vmem %s0, %s126
      $region24: #{tpu_custom_call.1} parent=19 // pred_fallthru
        _
    $region20: #{tpu_custom_call.1} parent=5 // pred_fallthru
      _
    %p128 = scmp.le.s32.totalorder 1, %s8
    %p129 = scmp.lt.s32.totalorder %s8, 5
    %p130 = pnand %p128, %p129
    %p131 = pneg %p130
    // Predicated region
    $region25: #{tpu_custom_call.1} parent=5 // pred_check
      _
    $region26: #{tpu_custom_call.1} parent=5 // pred_check_branch
      %133 = sbr.rel (%p130) target = $region28
    $region27: #{tpu_custom_call.1} parent=5 // pred_region
      %s134 = ssub.s32 %s8, 1
      %p135 = scmp.lt.s32.totalorder %s17, 1
      %s136 = scalar_select %p135, %s17, 1
      %p137 = scmp.lt.s32.totalorder %s18, 1
      %s138 = scalar_select %p137, %s18, 1
      %s139 = smul.addr %s136, 2
      %s140 = sadd.s32 %s138, %s139
      %s141 = smul.addr %s140, 4
      %s142 = scalar_lea.vmem %s0, %s141
      %p143 = pneg %p48
      %p144 = pneg %p45
      %p145 = pneg %p69
      %p146 = pneg %p66
      %p147 = pneg %p95
      %p148 = pneg %p92
      %p149 = scmp.lt.s32.totalorder %s17, 1
      %s150 = scalar_select %p149, %s17, 1
      %s151 = smul.addr %s150, 4
      %s152 = smul.addr %s151, 8
      %s153 = scalar_lea.vmem %s2, %s152
      %p154 = scmp.lt.s32.totalorder %s17, 1
      %s155 = scalar_select %p154, %s17, 1
      %p156 = scmp.lt.s32.totalorder %s18, 1
      %s157 = scalar_select %p156, %s18, 1
      %s158 = smul.addr %s155, 2
      %s159 = sadd.s32 %s157, %s158
      %s160 = smul.addr %s159, 4
      %s161 = scalar_lea.vmem %s0, %s160
      %p162 = scmp.lt.s32.totalorder %s17, 1
      %s163 = scalar_select %p162, %s17, 1
      %s164 = smul.addr %s163, 4
      %s165 = smul.addr %s164, 8
      %s166 = scalar_lea.vmem %s2, %s165
      %p168 = scmp.eq.s32.totalorder %s18, 0
      // Predicated region
      $region29: #{tpu_custom_call.1} parent=27 // pred_check
        %p169 = pneg %p168
      $region30: #{tpu_custom_call.1} parent=27 // pred_check_branch
        %171 = sbr.rel (%p169) target = $region32
      $region31: #{tpu_custom_call.1} parent=27 // pred_region
        %172 = vst [vmem:[#allocation2] sm:$0xff] 0.0
        %173 = vst [vmem:[#allocation2 + $0x8] sm:$0xff] 0.0
        %174 = vst [vmem:[#allocation2 + $0x10] sm:$0xff] 0.0
        %175 = vst [vmem:[#allocation2 + $0x18] sm:$0xff] 0.0
      $region32: #{tpu_custom_call.1} parent=27 // pred_fallthru
        _
      %v176 = vld [vmem:[%s1] sm:$0xf]
      %v177 = vld [vmem:[%s1 + $0x4] sm:$0xf]
      %v178 = vld [vmem:[%s1 + $0x8] sm:$0xf]
      %v179 = vld [vmem:[%s1 + $0xc] sm:$0xf]
      %v180 = vld [vmem:[%s161] sm:$0xf]
      %v181 = vpack.c.bf16 %v180, %v180
      %v186 = vunpack.c.l.b16 %v176
      %v187 = vunpack.c.l.b16 %v177
      %v188 = vunpack.c.l.b16 %v178
      %v189 = vunpack.c.l.b16 %v179
      %v190 = vpack.c.b16 %v187, %v186
      %v191 = vpack.c.b16 %v189, %v188
      %vm192 = vcmask 31744
      %v194 = vsel %vm192, %v190, 0
      %v197 = vsel %vm192, %v191, 0
      %vm199 = vcmask 1041408
      %v201 = vsel %vm199, %v181, 0
      %203 = vmatpush.bf16.msra.mxu0 0
      %204 = vmatpush.bf16.msra.mxu0 0
      %205 = vmatpush.bf16.msra.mxu0 0
      %206 = vmatpush.bf16.msra.mxu0 0
      %207 = vmatpush.bf16.msra.mxu0 0
      %208 = vmatpush.bf16.msra.mxu0 0
      %209 = vmatpush.bf16.msra.mxu0 0
      %210 = vmatpush.bf16.msra.mxu0 %v201
      %211 = vmatmul.bf16.gmra.mxu0 %v194
      %v212 = vpop.f32.mrf.mxu0
      %v213 = vadd.f32 0.0, %v212
      %v214 = vpop.f32.mrf.mxu0
      %v215 = vadd.f32 0.0, %v214
      %216 = vmatmul.bf16.gmra.mxu0 %v197
      %v217 = vpop.f32.mrf.mxu0
      %v218 = vadd.f32 0.0, %v217
      %v219 = vpop.f32.mrf.mxu0
      %v220 = vadd.f32 0.0, %v219
      %221 = vdwg.mxu0
      %v222 = vmul.f32 %v213, %v213
      %v223 = vmul.f32 %v215, %v215
      %v224 = vmul.f32 %v218, %v218
      %v225 = vmul.f32 %v220, %v220
      %s226 = smul.u32 %s18, 128
      %v227 = vlaneseq
      %v228 = vand.u32 %v227, 127
      %v229 = vstv %s226
      %v230 = vadd.s32 %v229, %v228
      %vm231 = vcmp.lt.s32.totalorder %v230, 144
      %v232 = vsel %vm231, %v222, 0.0
      %v233 = vsel %vm231, %v223, 0.0
      %v234 = vsel %vm231, %v224, 0.0
      %v235 = vsel %vm231, %v225, 0.0
      %v236 = vld [vmem:[#allocation2] sm:$0xff]
      %v237 = vld [vmem:[#allocation2 + $0x8] sm:$0xff]
      %v238 = vld [vmem:[#allocation2 + $0x10] sm:$0xff]
      %v239 = vld [vmem:[#allocation2 + $0x18] sm:$0xff]
      %v240 = vadd.f32 %v236, %v232
      %v241 = vadd.f32 %v237, %v233
      %v242 = vadd.f32 %v238, %v234
      %v243 = vadd.f32 %v239, %v235
      %244 = vst [vmem:[#allocation2] sm:$0xff] %v240
      %245 = vst [vmem:[#allocation2 + $0x8] sm:$0xff] %v241
      %246 = vst [vmem:[#allocation2 + $0x10] sm:$0xff] %v242
      %247 = vst [vmem:[#allocation2 + $0x18] sm:$0xff] %v243
      %p248 = scmp.eq.s32.totalorder %s18, 1
      // Predicated region
      $region33: #{tpu_custom_call.1} parent=27 // pred_check
        %p249 = pneg %p248
      $region34: #{tpu_custom_call.1} parent=27 // pred_check_branch
        %251 = sbr.rel (%p249) target = $region36
      $region35: #{tpu_custom_call.1} parent=27 // pred_region
        %v252 = vld [vmem:[#allocation2] sm:$0xff]
        %v253 = vld [vmem:[#allocation2 + $0x8] sm:$0xff]
        %v254 = vld [vmem:[#allocation2 + $0x10] sm:$0xff]
        %v255 = vld [vmem:[#allocation2 + $0x18] sm:$0xff]
        %256 = vadd.xlane.f32.xlu0 %v252
        %v257 = vpop.xlane.xlu0 %256
        %258 = vadd.xlane.f32.xlu0 %v253
        %v259 = vpop.xlane.xlu0 %258
        %260 = vadd.xlane.f32.xlu0 %v254
        %v261 = vpop.xlane.xlu0 %260
        %262 = vadd.xlane.f32.xlu0 %v255
        %v263 = vpop.xlane.xlu0 %262
        %v264 = vadd.f32 %v257, %v259
        %v265 = vadd.f32 %v264, %v261
        %v266 = vadd.f32 %v265, %v263
        %v267 = vrot.slane %v266, 4
        %v268 = vadd.f32 %v266, %v267
        %v269 = vrot.slane %v268, 2
        %v270 = vadd.f32 %v268, %v269
        %v271 = vrot.slane %v270, 1
        %v272 = vadd.f32 %v270, %v271
        %v273 = vrcp.pop 32.0
        %v274 = vmul.f32 32.0, %v273
        %v275 = vsub.f32 1.0, %v274
        %v276 = vmul.f32 %v273, %v275
        %v277 = vadd.f32 %v273, %v276
        %vm278 = vweird.f32 %v273
        %v279 = vsel %vm278, %v273, %v277
        %v280 = vmul.f32 %v272, %v279
        %v281 = vsub.f32 %v257, %v280
        %v282 = vsub.f32 %v259, %v280
        %v283 = vsub.f32 %v261, %v280
        %v284 = vsub.f32 %v263, %v280
        %v285 = vmul.f32 %v281, %v281
        %v286 = vmul.f32 %v282, %v282
        %v287 = vmul.f32 %v283, %v283
        %v288 = vmul.f32 %v284, %v284
        %v289 = vadd.f32 %v285, %v286
        %v290 = vadd.f32 %v289, %v287
        %v291 = vadd.f32 %v290, %v288
        %v292 = vrot.slane %v291, 4
        %v293 = vadd.f32 %v291, %v292
        %v294 = vrot.slane %v293, 2
        %v295 = vadd.f32 %v293, %v294
        %v296 = vrot.slane %v295, 1
        %v297 = vadd.f32 %v295, %v296
        %v298 = vrcp.pop 31.0
        %v299 = vmul.f32 31.0, %v298
        %v300 = vsub.f32 1.0, %v299
        %v301 = vmul.f32 %v298, %v300
        %v302 = vadd.f32 %v298, %v301
        %vm303 = vweird.f32 %v298
        %v304 = vsel %vm303, %v298, %v302
        %v305 = vmul.f32 %v297, %v304
        %v306 = vrsqrt.pop %v305
        %v307 = vmul.f32 %v306, %v305
        %v308 = vmul.f32 %v307, %v306
        %v309 = vmul.f32 0.5, %v308
        %v310 = vsub.f32 1.5, %v309
        %v311 = vmul.f32 %v306, %v310
        %v312 = vmul.f32 %v305, %v311
        %vm313 = vcmp.eq.f32.partialorder %v305, inf
        %v314 = vsel %vm313, %v305, %v312
        %vm315 = vcmp.eq.f32.partialorder %v305, 0.0
        %v316 = vand.u32 %v305, 2147483648
        %v317 = vsel %vm315, %v316, %v314
        %v318 = vadd.f32 %v317, 1e-08
        %v319 = vrcp.pop %v318
        %v320 = vmul.f32 %v318, %v319
        %v321 = vsub.f32 1.0, %v320
        %v322 = vmul.f32 %v319, %v321
        %v323 = vadd.f32 %v319, %v322
        %vm324 = vweird.f32 %v318
        %vm325 = vweird.f32 %v319
        %vm326 = vmor %vm324, %vm325
        %v327 = vsel %vm326, %v319, %v323
        %v328 = vand.u32 2147483647, %v318
        %vm329 = vcmp.eq.f32.partialorder %v328, 8.507059e+37
        %v330 = vand.u32 %v318, 2147483648
        %v331 = vor.u32 1.1754944e-38, %v330
        %v332 = vsel %vm329, %v331, %v327
        %v333 = vmul.f32 %v281, %v332
        %v334 = vmul.f32 %v282, %v332
        %v335 = vmul.f32 %v283, %v332
        %v336 = vmul.f32 %v284, %v332
        %vm337 = vcmask 7168
        %338 = vst.msk [vmem:[%s166] sm:$0xff] %vm337, %v333
        %339 = vst.msk [vmem:[%s166 + $0x8] sm:$0xff] %vm337, %v334
        %340 = vst.msk [vmem:[%s166 + $0x10] sm:$0xff] %vm337, %v335
        %341 = vst.msk [vmem:[%s166 + $0x18] sm:$0xff] %vm337, %v336
      $region36: #{tpu_custom_call.1} parent=27 // pred_fallthru
        _
      %p342 = scmp.lt.s32.totalorder %s17, 1
      %s343 = scalar_select %p342, %s17, 1
      %s344 = smul.addr %s343, 4
      %s345 = smul.addr %s344, 8
      %s346 = scalar_lea.vmem %s2, %s345
      // Predicated region
      $region37: #{tpu_custom_call.1} parent=27 // pred_check
        %p347 = pneg %p92
      $region38: #{tpu_custom_call.1} parent=27 // pred_check_branch
        %349 = sbr.rel (%p347) target = $region40
      $region39: #{tpu_custom_call.1} parent=27 // pred_region
        _
      $region40: #{tpu_custom_call.1} parent=27 // pred_fallthru
        _
    $region28: #{tpu_custom_call.1} parent=5 // pred_fallthru
      _
    %p350 = scmp.le.s32.totalorder 2, %s8
    // Predicated region
    $region41: #{tpu_custom_call.1} parent=5 // pred_check
      %p351 = pneg %p350
    $region42: #{tpu_custom_call.1} parent=5 // pred_check_branch
      %353 = sbr.rel (%p351) target = $region44
    $region43: #{tpu_custom_call.1} parent=5 // pred_region
      %s354 = ssub.s32 %s8, 2
      // Predicated region
      $region45: #{tpu_custom_call.1} parent=43 // pred_check
        %p355 = pneg %p98
      $region46: #{tpu_custom_call.1} parent=43 // pred_check_branch
        %357 = sbr.rel (%p355) target = $region48
      $region47: #{tpu_custom_call.1} parent=43 // pred_region
        %p358 = scmp.lt.s32.totalorder %s19, 1
        %s359 = scalar_select %p358, %s19, 1
        %s360 = smul.addr %s359, 4
        %s361 = smul.addr %s360, 8
        %s362 = scalar_lea.vmem %s2, %s361
      $region48: #{tpu_custom_call.1} parent=43 // pred_fallthru
        _
    $region44: #{tpu_custom_call.1} parent=5 // pred_fallthru
      _
  $region6: #{tpu_custom_call.1} parent=0 // loop_footer
    %s12 = sadd.s32 1, %s8
  $region7: #{tpu_custom_call.1} parent=0 // loop_footer_branch
    %7 = sbr.rel target = $region3
  $region8: #{tpu_custom_call.1} parent=0 // loop_exit
    _

</llo_original>
